<compile_context>
chip_gen: v7x
topology: tpu7x:2x2x1
jax: 0.10.0
libtpu: 0.0.40
codegen_flags: <defaults>
</compile_context>

<pallas_src>
import math

import jax
import jax.numpy as jnp
from jax.experimental import pallas as pl
from jax.experimental.pallas import tpu as pltpu


def _round_up(n, m):
    return ((n + m - 1) // m) * m


def _linear_kernel(x_ref, wt_ref, b_ref, o_ref):
    # x_ref:  (tb, tk)  bf16  activation tile
    # wt_ref: (tk, tn)  bf16  pre-transposed weight tile (W.T)
    # b_ref:  (1,  tn)  f32   bias tile
    # o_ref:  (tb, tn)  f32   output block, resident across the k grid axis
    k = pl.program_id(2)

    @pl.when(k == 0)
    def _():
        o_ref[...] = jnp.zeros_like(o_ref)

    # Canonical contraction: no in-kernel transpose of the weight tile.
    o_ref[...] += jnp.dot(
        x_ref[...], wt_ref[...], preferred_element_type=jnp.float32
    )

    @pl.when(k == pl.num_programs(2) - 1)
    def _():
        o_ref[...] += b_ref[...]


def make_net_forward(weight, bias, *, tile_b=256, tile_n=512, tile_k=1024,
                     weight_resident_bytes=4 << 20):
    """Prepare params once; return forward(x) for x of shape [B, ...]=[B, D].

    weight: [O, D] (PyTorch nn.Linear layout), bias: [O].
    """
    O, D = weight.shape
    O_pad = _round_up(O, 128)   # lane-dense output (full, unmasked vst)
    D_pad = _round_up(D, 128)

    # Tile selection: if the whole (padded, bf16) weight comfortably fits in
    # VMEM, keep it as ONE resident block -> it is streamed from HBM exactly
    # once and reused across all batch row tiles.  Otherwise tile N and K.
    if O_pad * D_pad * 2 <= weight_resident_bytes and D_pad <= 4096:
        tn, tk = O_pad, D_pad
    else:
        tn = min(tile_n, O_pad)
        O_pad = _round_up(O_pad, tn)
        tk = min(tile_k, D_pad)
        D_pad = _round_up(D_pad, tk)

    # One-time parameter prep (hoisted out of the per-call path):
    #  * bf16 cast (MXU-native, halves weight DMA)
    #  * pre-transpose to [D, O]
    #  * pad to tile multiples
    wt_p = jnp.pad(weight.astype(jnp.bfloat16).T,
                   ((0, D_pad - D), (0, O_pad - O)))          # [D_pad, O_pad]
    b_p = jnp.pad(bias.astype(jnp.float32),
                  (0, O_pad - O)).reshape(1, O_pad)           # [1, O_pad]

    def forward(x):
        B = x.shape[0]
        assert math.prod(x.shape[1:]) == D, "input feature size mismatch"
        out_dtype = x.dtype

        # Row tiling: sublane-aligned, parallel across TensorCores.
        tb = min(tile_b, _round_up(B, 8))
        B_pad = _round_up(B, tb)

        # Flatten (== torch.nn.Flatten) + bf16 cast; pad only if needed.
        x2d = x.reshape(B, D).astype(jnp.bfloat16)
        if (B_pad, D_pad) != (B, D):
            x2d = jnp.pad(x2d, ((0, B_pad - B), (0, D_pad - D)))

        grid = (B_pad // tb, O_pad // tn, D_pad // tk)

        # Double-buffered VMEM estimate -> explicit scoped-VMEM limit
        # (v5e default is only 16 MiB; v7x physical is 64 MiB -> cap there).
        est = 2 * (tb * tk * 2 + tk * tn * 2 + tn * 4 + tb * tn * 4)
        vmem_limit = min(max(2 * est, 32 << 20), 64 << 20)

        out = pl.pallas_call(
            _linear_kernel,
            out_shape=jax.ShapeDtypeStruct((B_pad, O_pad), jnp.float32),
            grid_spec=pltpu.PrefetchScalarGridSpec(
                num_scalar_prefetch=0,
                grid=grid,
                in_specs=[
                    pl.BlockSpec((tb, tk), lambda i, n, k: (i, k)),   # x
                    pl.BlockSpec((tk, tn), lambda i, n, k: (k, n)),   # W.T
                    pl.BlockSpec((1, tn), lambda i, n, k: (0, n)),    # bias
                ],
                out_specs=pl.BlockSpec((tb, tn), lambda i, n, k: (i, n)),
            ),
            compiler_params=pltpu.CompilerParams(
                dimension_semantics=("parallel", "parallel", "arbitrary"),
                vmem_limit_bytes=vmem_limit,
            ),
        )(x2d, wt_p, b_p)

        out = out[:B, :O]                 # slice away padding
        if out_dtype != jnp.float32:
            out = out.astype(out_dtype)
        return out

    return jax.jit(forward)


if __name__ == "__main__":
    key = jax.random.PRNGKey(0)
    kx, kw, kb = jax.random.split(key, 3)

    # Small shapes consistent with the module's forward:
    # x: [B=2, C=4, H=16, W=16] -> flatten -> D=1024, output_size=32
    B, C, H, W = 2, 4, 16, 16
    D = C * H * W
    O = 32

    x = jax.random.normal(kx, (B, C, H, W), dtype=jnp.float32)
    # Deterministic parameter init (mimicking nn.Linear's uniform init range).
    bound = 1.0 / (D ** 0.5)
    weight = jax.random.uniform(kw, (O, D), minval=-bound, maxval=bound,
                                dtype=jnp.float32)
    bias = jax.random.uniform(kb, (O,), minval=-bound, maxval=bound,
                              dtype=jnp.float32)

    # Param prep happens once here, not per forward call.
    net = make_net_forward(weight, bias)

    out = net(x)
    out = jax.block_until_ready(out)
    assert out.shape == (B, O)

    # Reference #1: same bf16 operand quantization as the kernel (tight tol).
    x_bf = x.reshape(B, D).astype(jnp.bfloat16).astype(jnp.float32)
    w_bf = weight.astype(jnp.bfloat16).astype(jnp.float32)
    ref_bf16 = x_bf @ w_bf.T + bias
    assert jnp.allclose(out, ref_bf16, atol=1e-3, rtol=1e-3)

    # Reference #2: full f32 math (loosened tol for expected bf16 error).
    ref_f32 = x.reshape(B, D) @ weight.T + bias
    assert jnp.allclose(out, ref_f32, atol=5e-2, rtol=5e-2)

    print("KERNEL_OK")
</pallas_src>

<mosaic_0001>
module attributes {stable_mosaic.version = 11 : i64} {
  func.func @_linear_kernel(%arg0: i32, %arg1: i32, %arg2: i32, %arg3: memref<8x1024xbf16, #tpu.memory_space<vmem>>, %arg4: memref<1024x128xbf16, #tpu.memory_space<vmem>>, %arg5: memref<1x128xf32, #tpu.memory_space<vmem>>, %arg6: memref<8x128xf32, #tpu.memory_space<vmem>>) attributes {dimension_semantics = [#tpu.dimension_semantics<parallel>, #tpu.dimension_semantics<parallel>, #tpu.dimension_semantics<arbitrary>], iteration_bounds = array<i64: 1, 1, 1>, scalar_prefetch = 0 : i64, scratch_operands = 0 : i64, tpu.core_type = #tpu.core_type<tc>, window_params = [{transform_indices = @transform_0, window_bounds = array<i64: 8, 1024>}, {transform_indices = @transform_1, window_bounds = array<i64: 1024, 128>}, {transform_indices = @transform_2, window_bounds = array<i64: 1, 128>}, {transform_indices = @transform_3, window_bounds = array<i64: 8, 128>}]} {
    %c0_i32 = arith.constant 0 : i32
    %0 = arith.cmpi eq, %arg2, %c0_i32 : i32
    %1 = arith.extui %0 : i1 to i32
    %c0_i32_0 = arith.constant 0 : i32
    %2 = arith.cmpi ne, %1, %c0_i32_0 : i32
    scf.if %2 {
      %cst_10 = arith.constant 0.000000e+00 : f32
      %12 = vector.broadcast %cst_10 : f32 to vector<8x128xf32>
      %c0_11 = arith.constant 0 : index
      %c0_12 = arith.constant 0 : index
      %13 = vector.load %arg6[%c0_11, %c0_12] : memref<8x128xf32, #tpu.memory_space<vmem>>, vector<8x128xf32>
      tpu.vector_store %arg6[%c0_11, %c0_12], %12 {strides = array<i32>} : memref<8x128xf32, #tpu.memory_space<vmem>>, vector<8x128xf32>,
    } else {
    }
    %c0 = arith.constant 0 : index
    %c0_1 = arith.constant 0 : index
    %3 = vector.load %arg6[%c0, %c0_1] : memref<8x128xf32, #tpu.memory_space<vmem>>, vector<8x128xf32>
    %c0_2 = arith.constant 0 : index
    %c0_3 = arith.constant 0 : index
    %4 = vector.load %arg3[%c0_2, %c0_3] : memref<8x1024xbf16, #tpu.memory_space<vmem>>, vector<8x1024xbf16>
    %c0_4 = arith.constant 0 : index
    %c0_5 = arith.constant 0 : index
    %5 = vector.load %arg4[%c0_4, %c0_5] : memref<1024x128xbf16, #tpu.memory_space<vmem>>, vector<1024x128xbf16>
    %cst = arith.constant dense<0.000000e+00> : vector<8x128xf32>
    %6 = tpu.matmul %4, %5, %cst {dimension_numbers = #tpu.dot_dimension_numbers<[1], [0], [0], [1], [0, 0, 1, 1], [], []>} : vector<8x1024xbf16>, vector<1024x128xbf16>, vector<8x128xf32> -> vector<8x128xf32>
    %7 = arith.addf %3, %6 : vector<8x128xf32>
    %c0_6 = arith.constant 0 : index
    %c0_7 = arith.constant 0 : index
    %8 = vector.load %arg6[%c0_6, %c0_7] : memref<8x128xf32, #tpu.memory_space<vmem>>, vector<8x128xf32>
    tpu.vector_store %arg6[%c0_6, %c0_7], %7 {strides = array<i32>} : memref<8x128xf32, #tpu.memory_space<vmem>>, vector<8x128xf32>,
    %c0_i32_8 = arith.constant 0 : i32
    %9 = arith.cmpi eq, %arg2, %c0_i32_8 : i32
    %10 = arith.extui %9 : i1 to i32
    %c0_i32_9 = arith.constant 0 : i32
    %11 = arith.cmpi ne, %10, %c0_i32_9 : i32
    scf.if %11 {
      %c0_10 = arith.constant 0 : index
      %c0_11 = arith.constant 0 : index
      %12 = vector.load %arg6[%c0_10, %c0_11] : memref<8x128xf32, #tpu.memory_space<vmem>>, vector<8x128xf32>
      %c0_12 = arith.constant 0 : index
      %c0_13 = arith.constant 0 : index
      %13 = vector.load %arg5[%c0_12, %c0_13] : memref<1x128xf32, #tpu.memory_space<vmem>>, vector<1x128xf32>
      %14 = vector.broadcast %13 : vector<1x128xf32> to vector<8x128xf32>
      %15 = arith.addf %12, %14 : vector<8x128xf32>
      %c0_14 = arith.constant 0 : index
      %c0_15 = arith.constant 0 : index
      %16 = vector.load %arg6[%c0_14, %c0_15] : memref<8x128xf32, #tpu.memory_space<vmem>>, vector<8x128xf32>
      tpu.vector_store %arg6[%c0_14, %c0_15], %15 {strides = array<i32>} : memref<8x128xf32, #tpu.memory_space<vmem>>, vector<8x128xf32>,
    } else {
    }
    return
  }
  func.func @transform_0(%arg0: i32, %arg1: i32, %arg2: i32) -> (i32, i32) {
    %c0_i32 = arith.constant 0 : i32
    return %arg0, %arg2 : i32, i32
  }
  func.func @transform_1(%arg0: i32, %arg1: i32, %arg2: i32) -> (i32, i32) {
    %c0_i32 = arith.constant 0 : i32
    return %arg2, %arg1 : i32, i32
  }
  func.func @transform_2(%arg0: i32, %arg1: i32, %arg2: i32) -> (i32, i32) {
    %c0_i32 = arith.constant 0 : i32
    %c0_i32_0 = arith.constant 0 : i32
    return %c0_i32, %arg1 : i32, i32
  }
  func.func @transform_3(%arg0: i32, %arg1: i32, %arg2: i32) -> (i32, i32) {
    %c0_i32 = arith.constant 0 : i32
    return %arg0, %arg1 : i32, i32
  }
}

</mosaic_0001>

<llo_original>
// kernel: forward.1
$region0: #{forward.1}
  #allocation0 [shape = 'u32[]', space=smem, size = 0x4, offset = 0x4, fixed_abs, tag = 'smem constant byte address 0x4 - core index']
  #allocation1 [shape = 'u32[144,128]{1,0:T(1,128)}', space=vmem, size = 0x12000, scoped, tag = 'internal scratch']
  %s0 = inlined_call_operand.vmem [shape: bf16[8,1024], index: 0, kind: input, shape index: {}]
  %s1 = inlined_call_operand.hbm [shape: bf16[1024,128], index: 1, kind: input, shape index: {}]
  %s2 = inlined_call_operand.vmem [shape: f32[1,128], index: 2, kind: input, shape index: {}]
  %s3 = inlined_call_operand.vmem [shape: f32[8,128], index: 3, kind: output, shape index: {}]
  %s4 = sld [smem:[#allocation0]]
  $region34: #{forward.1} parent=0
    _
  %s6 = ssub.s32 1, %s4
  %s7 = scalar_select 0, %s6, %s4
  $region1: #{forward.1} parent=0
    #allocation2 [shape = 'u8[262144]{0}', space=vmem, size = 0x40000, scoped, tag = 'input window, operand 1, single buffered']
    #allocation3 [shape = 's32[1]{0}', space=sflag, size = 0x4, scoped, tag = 'scoped memory for forward.1']
    %8 = vsyncpa [#allocation3], 0
    // Predicated region
    $region2: #{forward.1} parent=1 // pred_check
      _
    $region3: #{forward.1} parent=1 // pred_check_branch
      %10 = sbr.rel (0) target = $region5
    $region4: #{forward.1} parent=1 // pred_region
      _
    $region5: #{forward.1} parent=1 // pred_fallthru
      _
    // Predicated region
    $region6: #{forward.1} parent=1 // pred_check
      _
    $region7: #{forward.1} parent=1 // pred_check_branch
      %12 = sbr.rel (0) target = $region9
    $region8: #{forward.1} parent=1 // pred_region
      %s14 = ssub.s32 8192, 8192
      %15 = vsyncadd [#allocation3], %s14
      %s16 = sshll.u32 [#allocation2], 4
      %s17 = int_to_ptr.vmem [resolvable:$true] %s16
      %22 = dma.hbm_to_vmem [thread:$0]  %s1, 8192, %s17, [#allocation3], 64, 64, 4
    $region9: #{forward.1} parent=1 // pred_fallthru
      _
    // Predicated region
    $region10: #{forward.1} parent=1 // pred_check
      _
    $region11: #{forward.1} parent=1 // pred_check_branch
      %24 = sbr.rel (0) target = $region13
    $region12: #{forward.1} parent=1 // pred_region
      _
    $region13: #{forward.1} parent=1 // pred_fallthru
      _
    // Predicated region
    $region14: #{forward.1} parent=1 // pred_check
      _
    $region15: #{forward.1} parent=1 // pred_check_branch
      %26 = sbr.rel (0) target = $region17
    $region16: #{forward.1} parent=1 // pred_region
      %27 = dma.done [#allocation3], 8192
    $region17: #{forward.1} parent=1 // pred_fallthru
      _
    %p29 = scmp.eq.s32.totalorder 0, 0
    // Predicated region
    $region18: #{forward.1} parent=1 // pred_check
      %p30 = pneg %p29
    $region19: #{forward.1} parent=1 // pred_check_branch
      %32 = sbr.rel (%p30) target = $region21
    $region20: #{forward.1} parent=1 // pred_region
      %33 = vst [vmem:[%s3] sm:$0xff] 0.0
    $region21: #{forward.1} parent=1 // pred_fallthru
      _
    %v34 = vld [vmem:[%s3] sm:$0xff]
    %v35 = vld [vmem:[%s0] sm:$0xff]
    %v36 = vld [vmem:[%s0 + $0x8] sm:$0xff]
    %v37 = vld [vmem:[%s0 + $0x10] sm:$0xff]
    %v38 = vld [vmem:[%s0 + $0x18] sm:$0xff]
    %v39 = vld [vmem:[#allocation2] sm:$0xf]
    %v40 = vld [vmem:[#allocation2 + $0x4] sm:$0xf]
    %v41 = vld [vmem:[#allocation2 + $0x8] sm:$0xf]
    %v42 = vld [vmem:[#allocation2 + $0xc] sm:$0xf]
    %v43 = vld [vmem:[#allocation2 + $0x10] sm:$0xf]
    %v44 = vld [vmem:[#allocation2 + $0x14] sm:$0xf]
    %v45 = vld [vmem:[#allocation2 + $0x18] sm:$0xf]
    %v46 = vld [vmem:[#allocation2 + $0x1c] sm:$0xf]
    %v47 = vld [vmem:[#allocation2 + $0x20] sm:$0xf]
    %v48 = vld [vmem:[#allocation2 + $0x24] sm:$0xf]
    %v49 = vld [vmem:[#allocation2 + $0x28] sm:$0xf]
    %v50 = vld [vmem:[#allocation2 + $0x2c] sm:$0xf]
    %v51 = vld [vmem:[#allocation2 + $0x30] sm:$0xf]
    %v52 = vld [vmem:[#allocation2 + $0x34] sm:$0xf]
    %v53 = vld [vmem:[#allocation2 + $0x38] sm:$0xf]
    %v54 = vld [vmem:[#allocation2 + $0x3c] sm:$0xf]
    %v55 = vld [vmem:[#allocation2 + $0x40] sm:$0xf]
    %v56 = vld [vmem:[#allocation2 + $0x44] sm:$0xf]
    %v57 = vld [vmem:[#allocation2 + $0x48] sm:$0xf]
    %v58 = vld [vmem:[#allocation2 + $0x4c] sm:$0xf]
    %v59 = vld [vmem:[#allocation2 + $0x50] sm:$0xf]
    %v60 = vld [vmem:[#allocation2 + $0x54] sm:$0xf]
    %v61 = vld [vmem:[#allocation2 + $0x58] sm:$0xf]
    %v62 = vld [vmem:[#allocation2 + $0x5c] sm:$0xf]
    %v63 = vld [vmem:[#allocation2 + $0x60] sm:$0xf]
    %v64 = vld [vmem:[#allocation2 + $0x64] sm:$0xf]
    %v65 = vld [vmem:[#allocation2 + $0x68] sm:$0xf]
    %v66 = vld [vmem:[#allocation2 + $0x6c] sm:$0xf]
    %v67 = vld [vmem:[#allocation2 + $0x70] sm:$0xf]
    %v68 = vld [vmem:[#allocation2 + $0x74] sm:$0xf]
    %v69 = vld [vmem:[#allocation2 + $0x78] sm:$0xf]
    %v70 = vld [vmem:[#allocation2 + $0x7c] sm:$0xf]
    %v71 = vld [vmem:[#allocation2 + $0x80] sm:$0xf]
    %v72 = vld [vmem:[#allocation2 + $0x84] sm:$0xf]
    %v73 = vld [vmem:[#allocation2 + $0x88] sm:$0xf]
    %v74 = vld [vmem:[#allocation2 + $0x8c] sm:$0xf]
    %v75 = vld [vmem:[#allocation2 + $0x90] sm:$0xf]
    %v76 = vld [vmem:[#allocation2 + $0x94] sm:$0xf]
    %v77 = vld [vmem:[#allocation2 + $0x98] sm:$0xf]
    %v78 = vld [vmem:[#allocation2 + $0x9c] sm:$0xf]
    %v79 = vld [vmem:[#allocation2 + $0xa0] sm:$0xf]
    %v80 = vld [vmem:[#allocation2 + $0xa4] sm:$0xf]
    %v81 = vld [vmem:[#allocation2 + $0xa8] sm:$0xf]
    %v82 = vld [vmem:[#allocation2 + $0xac] sm:$0xf]
    %v83 = vld [vmem:[#allocation2 + $0xb0] sm:$0xf]
    %v84 = vld [vmem:[#allocation2 + $0xb4] sm:$0xf]
    %v85 = vld [vmem:[#allocation2 + $0xb8] sm:$0xf]
    %v86 = vld [vmem:[#allocation2 + $0xbc] sm:$0xf]
    %v87 = vld [vmem:[#allocation2 + $0xc0] sm:$0xf]
    %v88 = vld [vmem:[#allocation2 + $0xc4] sm:$0xf]
    %v89 = vld [vmem:[#allocation2 + $0xc8] sm:$0xf]
    %v90 = vld [vmem:[#allocation2 + $0xcc] sm:$0xf]
    %v91 = vld [vmem:[#allocation2 + $0xd0] sm:$0xf]
    %v92 = vld [vmem:[#allocation2 + $0xd4] sm:$0xf]
    %v93 = vld [vmem:[#allocation2 + $0xd8] sm:$0xf]
    %v94 = vld [vmem:[#allocation2 + $0xdc] sm:$0xf]
    %v95 = vld [vmem:[#allocation2 + $0xe0] sm:$0xf]
    %v96 = vld [vmem:[#allocation2 + $0xe4] sm:$0xf]
    %v97 = vld [vmem:[#allocation2 + $0xe8] sm:$0xf]
    %v98 = vld [vmem:[#allocation2 + $0xec] sm:$0xf]
    %v99 = vld [vmem:[#allocation2 + $0xf0] sm:$0xf]
    %v100 = vld [vmem:[#allocation2 + $0xf4] sm:$0xf]
    %v101 = vld [vmem:[#allocation2 + $0xf8] sm:$0xf]
    %v102 = vld [vmem:[#allocation2 + $0xfc] sm:$0xf]
    %v103 = vld [vmem:[#allocation2 + $0x100] sm:$0xf]
    %v104 = vld [vmem:[#allocation2 + $0x104] sm:$0xf]
    %v105 = vld [vmem:[#allocation2 + $0x108] sm:$0xf]
    %v106 = vld [vmem:[#allocation2 + $0x10c] sm:$0xf]
    %v107 = vld [vmem:[#allocation2 + $0x110] sm:$0xf]
    %v108 = vld [vmem:[#allocation2 + $0x114] sm:$0xf]
    %v109 = vld [vmem:[#allocation2 + $0x118] sm:$0xf]
    %v110 = vld [vmem:[#allocation2 + $0x11c] sm:$0xf]
    %v111 = vld [vmem:[#allocation2 + $0x120] sm:$0xf]
    %v112 = vld [vmem:[#allocation2 + $0x124] sm:$0xf]
    %v113 = vld [vmem:[#allocation2 + $0x128] sm:$0xf]
    %v114 = vld [vmem:[#allocation2 + $0x12c] sm:$0xf]
    %v115 = vld [vmem:[#allocation2 + $0x130] sm:$0xf]
    %v116 = vld [vmem:[#allocation2 + $0x134] sm:$0xf]
    %v117 = vld [vmem:[#allocation2 + $0x138] sm:$0xf]
    %v118 = vld [vmem:[#allocation2 + $0x13c] sm:$0xf]
    %v119 = vld [vmem:[#allocation2 + $0x140] sm:$0xf]
    %v120 = vld [vmem:[#allocation2 + $0x144] sm:$0xf]
    %v121 = vld [vmem:[#allocation2 + $0x148] sm:$0xf]
    %v122 = vld [vmem:[#allocation2 + $0x14c] sm:$0xf]
    %v123 = vld [vmem:[#allocation2 + $0x150] sm:$0xf]
    %v124 = vld [vmem:[#allocation2 + $0x154] sm:$0xf]
    %v125 = vld [vmem:[#allocation2 + $0x158] sm:$0xf]
    %v126 = vld [vmem:[#allocation2 + $0x15c] sm:$0xf]
    %v127 = vld [vmem:[#allocation2 + $0x160] sm:$0xf]
    %v128 = vld [vmem:[#allocation2 + $0x164] sm:$0xf]
    %v129 = vld [vmem:[#allocation2 + $0x168] sm:$0xf]
    %v130 = vld [vmem:[#allocation2 + $0x16c] sm:$0xf]
    %v131 = vld [vmem:[#allocation2 + $0x170] sm:$0xf]
    %v132 = vld [vmem:[#allocation2 + $0x174] sm:$0xf]
    %v133 = vld [vmem:[#allocation2 + $0x178] sm:$0xf]
    %v134 = vld [vmem:[#allocation2 + $0x17c] sm:$0xf]
    %v135 = vld [vmem:[#allocation2 + $0x180] sm:$0xf]
    %v136 = vld [vmem:[#allocation2 + $0x184] sm:$0xf]
    %v137 = vld [vmem:[#allocation2 + $0x188] sm:$0xf]
    %v138 = vld [vmem:[#allocation2 + $0x18c] sm:$0xf]
    %v139 = vld [vmem:[#allocation2 + $0x190] sm:$0xf]
    %v140 = vld [vmem:[#allocation2 + $0x194] sm:$0xf]
    %v141 = vld [vmem:[#allocation2 + $0x198] sm:$0xf]
    %v142 = vld [vmem:[#allocation2 + $0x19c] sm:$0xf]
    %v143 = vld [vmem:[#allocation2 + $0x1a0] sm:$0xf]
    %v144 = vld [vmem:[#allocation2 + $0x1a4] sm:$0xf]
    %v145 = vld [vmem:[#allocation2 + $0x1a8] sm:$0xf]
    %v146 = vld [vmem:[#allocation2 + $0x1ac] sm:$0xf]
    %v147 = vld [vmem:[#allocation2 + $0x1b0] sm:$0xf]
    %v148 = vld [vmem:[#allocation2 + $0x1b4] sm:$0xf]
    %v149 = vld [vmem:[#allocation2 + $0x1b8] sm:$0xf]
    %v150 = vld [vmem:[#allocation2 + $0x1bc] sm:$0xf]
    %v151 = vld [vmem:[#allocation2 + $0x1c0] sm:$0xf]
    %v152 = vld [vmem:[#allocation2 + $0x1c4] sm:$0xf]
    %v153 = vld [vmem:[#allocation2 + $0x1c8] sm:$0xf]
    %v154 = vld [vmem:[#allocation2 + $0x1cc] sm:$0xf]
    %v155 = vld [vmem:[#allocation2 + $0x1d0] sm:$0xf]
    %v156 = vld [vmem:[#allocation2 + $0x1d4] sm:$0xf]
    %v157 = vld [vmem:[#allocation2 + $0x1d8] sm:$0xf]
    %v158 = vld [vmem:[#allocation2 + $0x1dc] sm:$0xf]
    %v159 = vld [vmem:[#allocation2 + $0x1e0] sm:$0xf]
    %v160 = vld [vmem:[#allocation2 + $0x1e4] sm:$0xf]
    %v161 = vld [vmem:[#allocation2 + $0x1e8] sm:$0xf]
    %v162 = vld [vmem:[#allocation2 + $0x1ec] sm:$0xf]
    %v163 = vld [vmem:[#allocation2 + $0x1f0] sm:$0xf]
    %v164 = vld [vmem:[#allocation2 + $0x1f4] sm:$0xf]
    %v165 = vld [vmem:[#allocation2 + $0x1f8] sm:$0xf]
    %v166 = vld [vmem:[#allocation2 + $0x1fc] sm:$0xf]
    %v171 = vunpack.c.l.b16 %v35
    %v172 = vunpack.c.h.b16 %v35
    %v173 = vunpack.c.l.b16 %v36
    %v174 = vunpack.c.h.b16 %v36
    %v175 = vunpack.c.l.b16 %v37
    %v176 = vunpack.c.h.b16 %v37
    %v177 = vunpack.c.l.b16 %v38
    %v178 = vunpack.c.h.b16 %v38
    %v179 = vpack.c.b16 %v171, %v171
    %v180 = vpack.c.b16 %v172, %v172
    %v181 = vpack.c.b16 %v173, %v173
    %v182 = vpack.c.b16 %v174, %v174
    %v183 = vpack.c.b16 %v175, %v175
    %v184 = vpack.c.b16 %v176, %v176
    %v185 = vpack.c.b16 %v177, %v177
    %v186 = vpack.c.b16 %v178, %v178
    %v323 = vunpack.c.l.b16 %v39
    %v324 = vunpack.c.l.b16 %v40
    %v325 = vunpack.c.l.b16 %v41
    %v326 = vunpack.c.l.b16 %v42
    %v327 = vunpack.c.l.b16 %v43
    %v328 = vunpack.c.l.b16 %v44
    %v329 = vunpack.c.l.b16 %v45
    %v330 = vunpack.c.l.b16 %v46
    %v331 = vunpack.c.l.b16 %v47
    %v332 = vunpack.c.l.b16 %v48
    %v333 = vunpack.c.l.b16 %v49
    %v334 = vunpack.c.l.b16 %v50
    %v335 = vunpack.c.l.b16 %v51
    %v336 = vunpack.c.l.b16 %v52
    %v337 = vunpack.c.l.b16 %v53
    %v338 = vunpack.c.l.b16 %v54
    %v339 = vunpack.c.l.b16 %v55
    %v340 = vunpack.c.l.b16 %v56
    %v341 = vunpack.c.l.b16 %v57
    %v342 = vunpack.c.l.b16 %v58
    %v343 = vunpack.c.l.b16 %v59
    %v344 = vunpack.c.l.b16 %v60
    %v345 = vunpack.c.l.b16 %v61
    %v346 = vunpack.c.l.b16 %v62
    %v347 = vunpack.c.l.b16 %v63
    %v348 = vunpack.c.l.b16 %v64
    %v349 = vunpack.c.l.b16 %v65
    %v350 = vunpack.c.l.b16 %v66
    %v351 = vunpack.c.l.b16 %v67
    %v352 = vunpack.c.l.b16 %v68
    %v353 = vunpack.c.l.b16 %v69
    %v354 = vunpack.c.l.b16 %v70
    %v355 = vunpack.c.l.b16 %v71
    %v356 = vunpack.c.l.b16 %v72
    %v357 = vunpack.c.l.b16 %v73
    %v358 = vunpack.c.l.b16 %v74
    %v359 = vunpack.c.l.b16 %v75
    %v360 = vunpack.c.l.b16 %v76
    %v361 = vunpack.c.l.b16 %v77
    %v362 = vunpack.c.l.b16 %v78
    %v363 = vunpack.c.l.b16 %v79
    %v364 = vunpack.c.l.b16 %v80
    %v365 = vunpack.c.l.b16 %v81
    %v366 = vunpack.c.l.b16 %v82
    %v367 = vunpack.c.l.b16 %v83
    %v368 = vunpack.c.l.b16 %v84
    %v369 = vunpack.c.l.b16 %v85
    %v370 = vunpack.c.l.b16 %v86
    %v371 = vunpack.c.l.b16 %v87
    %v372 = vunpack.c.l.b16 %v88
    %v373 = vunpack.c.l.b16 %v89
    %v374 = vunpack.c.l.b16 %v90
    %v375 = vunpack.c.l.b16 %v91
    %v376 = vunpack.c.l.b16 %v92
    %v377 = vunpack.c.l.b16 %v93
    %v378 = vunpack.c.l.b16 %v94
    %v379 = vunpack.c.l.b16 %v95
    %v380 = vunpack.c.l.b16 %v96
    %v381 = vunpack.c.l.b16 %v97
    %v382 = vunpack.c.l.b16 %v98
    %v383 = vunpack.c.l.b16 %v99
    %v384 = vunpack.c.l.b16 %v100
    %v385 = vunpack.c.l.b16 %v101
    %v386 = vunpack.c.l.b16 %v102
    %v387 = vunpack.c.l.b16 %v103
    %v388 = vunpack.c.l.b16 %v104
    %v389 = vunpack.c.l.b16 %v105
    %v390 = vunpack.c.l.b16 %v106
    %v391 = vunpack.c.l.b16 %v107
    %v392 = vunpack.c.l.b16 %v108
    %v393 = vunpack.c.l.b16 %v109
    %v394 = vunpack.c.l.b16 %v110
    %v395 = vunpack.c.l.b16 %v111
    %v396 = vunpack.c.l.b16 %v112
    %v397 = vunpack.c.l.b16 %v113
    %v398 = vunpack.c.l.b16 %v114
    %v399 = vunpack.c.l.b16 %v115
    %v400 = vunpack.c.l.b16 %v116
    %v401 = vunpack.c.l.b16 %v117
    %v402 = vunpack.c.l.b16 %v118
    %v403 = vunpack.c.l.b16 %v119
    %v404 = vunpack.c.l.b16 %v120
    %v405 = vunpack.c.l.b16 %v121
    %v406 = vunpack.c.l.b16 %v122
    %v407 = vunpack.c.l.b16 %v123
    %v408 = vunpack.c.l.b16 %v124
    %v409 = vunpack.c.l.b16 %v125
    %v410 = vunpack.c.l.b16 %v126
    %v411 = vunpack.c.l.b16 %v127
    %v412 = vunpack.c.l.b16 %v128
    %v413 = vunpack.c.l.b16 %v129
    %v414 = vunpack.c.l.b16 %v130
    %v415 = vunpack.c.l.b16 %v131
    %v416 = vunpack.c.l.b16 %v132
    %v417 = vunpack.c.l.b16 %v133
    %v418 = vunpack.c.l.b16 %v134
    %v419 = vunpack.c.l.b16 %v135
    %v420 = vunpack.c.l.b16 %v136
    %v421 = vunpack.c.l.b16 %v137
    %v422 = vunpack.c.l.b16 %v138
    %v423 = vunpack.c.l.b16 %v139
    %v424 = vunpack.c.l.b16 %v140
    %v425 = vunpack.c.l.b16 %v141
    %v426 = vunpack.c.l.b16 %v142
    %v427 = vunpack.c.l.b16 %v143
    %v428 = vunpack.c.l.b16 %v144
    %v429 = vunpack.c.l.b16 %v145
    %v430 = vunpack.c.l.b16 %v146
    %v431 = vunpack.c.l.b16 %v147
    %v432 = vunpack.c.l.b16 %v148
    %v433 = vunpack.c.l.b16 %v149
    %v434 = vunpack.c.l.b16 %v150
    %v435 = vunpack.c.l.b16 %v151
    %v436 = vunpack.c.l.b16 %v152
    %v437 = vunpack.c.l.b16 %v153
    %v438 = vunpack.c.l.b16 %v154
    %v439 = vunpack.c.l.b16 %v155
    %v440 = vunpack.c.l.b16 %v156
    %v441 = vunpack.c.l.b16 %v157
    %v442 = vunpack.c.l.b16 %v158
    %v443 = vunpack.c.l.b16 %v159
    %v444 = vunpack.c.l.b16 %v160
    %v445 = vunpack.c.l.b16 %v161
    %v446 = vunpack.c.l.b16 %v162
    %v447 = vunpack.c.l.b16 %v163
    %v448 = vunpack.c.l.b16 %v164
    %v449 = vunpack.c.l.b16 %v165
    %v450 = vunpack.c.l.b16 %v166
    %v451 = vpack.c.b16 %v324, %v323
    %v452 = vpack.c.b16 %v326, %v325
    %v453 = vpack.c.b16 %v328, %v327
    %v454 = vpack.c.b16 %v330, %v329
    %v455 = vpack.c.b16 %v332, %v331
    %v456 = vpack.c.b16 %v334, %v333
    %v457 = vpack.c.b16 %v336, %v335
    %v458 = vpack.c.b16 %v338, %v337
    %v459 = vpack.c.b16 %v340, %v339
    %v460 = vpack.c.b16 %v342, %v341
    %v461 = vpack.c.b16 %v344, %v343
    %v462 = vpack.c.b16 %v346, %v345
    %v463 = vpack.c.b16 %v348, %v347
    %v464 = vpack.c.b16 %v350, %v349
    %v465 = vpack.c.b16 %v352, %v351
    %v466 = vpack.c.b16 %v354, %v353
    %v467 = vpack.c.b16 %v356, %v355
    %v468 = vpack.c.b16 %v358, %v357
    %v469 = vpack.c.b16 %v360, %v359
    %v470 = vpack.c.b16 %v362, %v361
    %v471 = vpack.c.b16 %v364, %v363
    %v472 = vpack.c.b16 %v366, %v365
    %v473 = vpack.c.b16 %v368, %v367
    %v474 = vpack.c.b16 %v370, %v369
    %v475 = vpack.c.b16 %v372, %v371
    %v476 = vpack.c.b16 %v374, %v373
    %v477 = vpack.c.b16 %v376, %v375
    %v478 = vpack.c.b16 %v378, %v377
    %v479 = vpack.c.b16 %v380, %v379
    %v480 = vpack.c.b16 %v382, %v381
    %v481 = vpack.c.b16 %v384, %v383
    %v482 = vpack.c.b16 %v386, %v385
    %v483 = vpack.c.b16 %v388, %v387
    %v484 = vpack.c.b16 %v390, %v389
    %v485 = vpack.c.b16 %v392, %v391
    %v486 = vpack.c.b16 %v394, %v393
    %v487 = vpack.c.b16 %v396, %v395
    %v488 = vpack.c.b16 %v398, %v397
    %v489 = vpack.c.b16 %v400, %v399
    %v490 = vpack.c.b16 %v402, %v401
    %v491 = vpack.c.b16 %v404, %v403
    %v492 = vpack.c.b16 %v406, %v405
    %v493 = vpack.c.b16 %v408, %v407
    %v494 = vpack.c.b16 %v410, %v409
    %v495 = vpack.c.b16 %v412, %v411
    %v496 = vpack.c.b16 %v414, %v413
    %v497 = vpack.c.b16 %v416, %v415
    %v498 = vpack.c.b16 %v418, %v417
    %v499 = vpack.c.b16 %v420, %v419
    %v500 = vpack.c.b16 %v422, %v421
    %v501 = vpack.c.b16 %v424, %v423
    %v502 = vpack.c.b16 %v426, %v425
    %v503 = vpack.c.b16 %v428, %v427
    %v504 = vpack.c.b16 %v430, %v429
    %v505 = vpack.c.b16 %v432, %v431
    %v506 = vpack.c.b16 %v434, %v433
    %v507 = vpack.c.b16 %v436, %v435
    %v508 = vpack.c.b16 %v438, %v437
    %v509 = vpack.c.b16 %v440, %v439
    %v510 = vpack.c.b16 %v442, %v441
    %v511 = vpack.c.b16 %v444, %v443
    %v512 = vpack.c.b16 %v446, %v445
    %v513 = vpack.c.b16 %v448, %v447
    %v514 = vpack.c.b16 %v450, %v449
    %579 = vmatprep.subr.bf16.mxu0 0
    %580 = vmatpush1.bf16.msra.mxu0 %v451
    %581 = vmatprep.subr.bf16.mxu0 0
    %582 = vmatpush1.bf16.msra.mxu0 %v452
    %583 = vmatprep.subr.bf16.mxu0 0
    %584 = vmatpush1.bf16.msra.mxu0 %v453
    %585 = vmatprep.subr.bf16.mxu0 0
    %586 = vmatpush1.bf16.msra.mxu0 %v454
    %587 = vmatprep.subr.bf16.mxu0 0
    %588 = vmatpush1.bf16.msra.mxu0 %v455
    %589 = vmatprep.subr.bf16.mxu0 0
    %590 = vmatpush1.bf16.msra.mxu0 %v456
    %591 = vmatprep.subr.bf16.mxu0 0
    %592 = vmatpush1.bf16.msra.mxu0 %v457
    %593 = vmatprep.subr.bf16.mxu0 0
    %594 = vmatpush1.bf16.msra.mxu0 %v458
    %595 = vmatprep.subr.bf16.mxu0 0
    %596 = vmatpush1.bf16.msra.mxu0 %v459
    %597 = vmatprep.subr.bf16.mxu0 0
    %598 = vmatpush1.bf16.msra.mxu0 %v460
    %599 = vmatprep.subr.bf16.mxu0 0
    %600 = vmatpush1.bf16.msra.mxu0 %v461
    %601 = vmatprep.subr.bf16.mxu0 0
    %602 = vmatpush1.bf16.msra.mxu0 %v462
    %603 = vmatprep.subr.bf16.mxu0 0
    %604 = vmatpush1.bf16.msra.mxu0 %v463
    %605 = vmatprep.subr.bf16.mxu0 0
    %606 = vmatpush1.bf16.msra.mxu0 %v464
    %607 = vmatprep.subr.bf16.mxu0 0
    %608 = vmatpush1.bf16.msra.mxu0 %v465
    %609 = vmatprep.subr.bf16.mxu0 0
    %610 = vmatpush1.bf16.msra.mxu0 %v466
    %611 = vmatprep.mubr.bf16.mxu0 %v180
    %612 = vmatmul.mubr.bf16.gmra.mrb[0].mxu0 %v179
    %v613 = vpop.f32.mrb[0].mxu0
    %v614 = vadd.f32 0.0, %v613
    %v615 = vpop.f32.mrb[0].mxu0
    %v616 = vpop.f32.mrb[0].mxu0
    %v617 = vpop.f32.mrb[0].mxu0
    %618 = vdwg.mxu0
    %619 = vmatprep.subr.bf16.mxu0 0
    %620 = vmatpush1.bf16.msra.mxu0 %v467
    %621 = vmatprep.subr.bf16.mxu0 0
    %622 = vmatpush1.bf16.msra.mxu0 %v468
    %623 = vmatprep.subr.bf16.mxu0 0
    %624 = vmatpush1.bf16.msra.mxu0 %v469
    %625 = vmatprep.subr.bf16.mxu0 0
    %626 = vmatpush1.bf16.msra.mxu0 %v470
    %627 = vmatprep.subr.bf16.mxu0 0
    %628 = vmatpush1.bf16.msra.mxu0 %v471
    %629 = vmatprep.subr.bf16.mxu0 0
    %630 = vmatpush1.bf16.msra.mxu0 %v472
    %631 = vmatprep.subr.bf16.mxu0 0
    %632 = vmatpush1.bf16.msra.mxu0 %v473
    %633 = vmatprep.subr.bf16.mxu0 0
    %634 = vmatpush1.bf16.msra.mxu0 %v474
    %635 = vmatprep.subr.bf16.mxu0 0
    %636 = vmatpush1.bf16.msra.mxu0 %v475
    %637 = vmatprep.subr.bf16.mxu0 0
    %638 = vmatpush1.bf16.msra.mxu0 %v476
    %639 = vmatprep.subr.bf16.mxu0 0
    %640 = vmatpush1.bf16.msra.mxu0 %v477
    %641 = vmatprep.subr.bf16.mxu0 0
    %642 = vmatpush1.bf16.msra.mxu0 %v478
    %643 = vmatprep.subr.bf16.mxu0 0
    %644 = vmatpush1.bf16.msra.mxu0 %v479
    %645 = vmatprep.subr.bf16.mxu0 0
    %646 = vmatpush1.bf16.msra.mxu0 %v480
    %647 = vmatprep.subr.bf16.mxu0 0
    %648 = vmatpush1.bf16.msra.mxu0 %v481
    %649 = vmatprep.subr.bf16.mxu0 0
    %650 = vmatpush1.bf16.msra.mxu0 %v482
    %651 = vmatprep.mubr.bf16.mxu0 %v182
    %652 = vmatmul.mubr.bf16.gmra.mrb[0].mxu0 %v181
    %v653 = vpop.f32.mrb[0].mxu0
    %v654 = vadd.f32 %v614, %v653
    %v655 = vpop.f32.mrb[0].mxu0
    %v656 = vpop.f32.mrb[0].mxu0
    %v657 = vpop.f32.mrb[0].mxu0
    %658 = vdwg.mxu0
    %659 = vmatprep.subr.bf16.mxu0 0
    %660 = vmatpush1.bf16.msra.mxu0 %v483
    %661 = vmatprep.subr.bf16.mxu0 0
    %662 = vmatpush1.bf16.msra.mxu0 %v484
    %663 = vmatprep.subr.bf16.mxu0 0
    %664 = vmatpush1.bf16.msra.mxu0 %v485
    %665 = vmatprep.subr.bf16.mxu0 0
    %666 = vmatpush1.bf16.msra.mxu0 %v486
    %667 = vmatprep.subr.bf16.mxu0 0
    %668 = vmatpush1.bf16.msra.mxu0 %v487
    %669 = vmatprep.subr.bf16.mxu0 0
    %670 = vmatpush1.bf16.msra.mxu0 %v488
    %671 = vmatprep.subr.bf16.mxu0 0
    %672 = vmatpush1.bf16.msra.mxu0 %v489
    %673 = vmatprep.subr.bf16.mxu0 0
    %674 = vmatpush1.bf16.msra.mxu0 %v490
    %675 = vmatprep.subr.bf16.mxu0 0
    %676 = vmatpush1.bf16.msra.mxu0 %v491
    %677 = vmatprep.subr.bf16.mxu0 0
    %678 = vmatpush1.bf16.msra.mxu0 %v492
    %679 = vmatprep.subr.bf16.mxu0 0
    %680 = vmatpush1.bf16.msra.mxu0 %v493
    %681 = vmatprep.subr.bf16.mxu0 0
    %682 = vmatpush1.bf16.msra.mxu0 %v494
    %683 = vmatprep.subr.bf16.mxu0 0
    %684 = vmatpush1.bf16.msra.mxu0 %v495
    %685 = vmatprep.subr.bf16.mxu0 0
    %686 = vmatpush1.bf16.msra.mxu0 %v496
    %687 = vmatprep.subr.bf16.mxu0 0
    %688 = vmatpush1.bf16.msra.mxu0 %v497
    %689 = vmatprep.subr.bf16.mxu0 0
    %690 = vmatpush1.bf16.msra.mxu0 %v498
    %691 = vmatprep.mubr.bf16.mxu0 %v184
    %692 = vmatmul.mubr.bf16.gmra.mrb[0].mxu0 %v183
    %v693 = vpop.f32.mrb[0].mxu0
    %v694 = vadd.f32 %v654, %v693
    %v695 = vpop.f32.mrb[0].mxu0
    %v696 = vpop.f32.mrb[0].mxu0
    %v697 = vpop.f32.mrb[0].mxu0
    %698 = vdwg.mxu0
    %699 = vmatprep.subr.bf16.mxu0 0
    %700 = vmatpush1.bf16.msra.mxu0 %v499
    %701 = vmatprep.subr.bf16.mxu0 0
    %702 = vmatpush1.bf16.msra.mxu0 %v500
    %703 = vmatprep.subr.bf16.mxu0 0
    %704 = vmatpush1.bf16.msra.mxu0 %v501
    %705 = vmatprep.subr.bf16.mxu0 0
    %706 = vmatpush1.bf16.msra.mxu0 %v502
    %707 = vmatprep.subr.bf16.mxu0 0
    %708 = vmatpush1.bf16.msra.mxu0 %v503
    %709 = vmatprep.subr.bf16.mxu0 0
    %710 = vmatpush1.bf16.msra.mxu0 %v504
    %711 = vmatprep.subr.bf16.mxu0 0
    %712 = vmatpush1.bf16.msra.mxu0 %v505
    %713 = vmatprep.subr.bf16.mxu0 0
    %714 = vmatpush1.bf16.msra.mxu0 %v506
    %715 = vmatprep.subr.bf16.mxu0 0
    %716 = vmatpush1.bf16.msra.mxu0 %v507
    %717 = vmatprep.subr.bf16.mxu0 0
    %718 = vmatpush1.bf16.msra.mxu0 %v508
    %719 = vmatprep.subr.bf16.mxu0 0
    %720 = vmatpush1.bf16.msra.mxu0 %v509
    %721 = vmatprep.subr.bf16.mxu0 0
    %722 = vmatpush1.bf16.msra.mxu0 %v510
    %723 = vmatprep.subr.bf16.mxu0 0
    %724 = vmatpush1.bf16.msra.mxu0 %v511
    %725 = vmatprep.subr.bf16.mxu0 0
    %726 = vmatpush1.bf16.msra.mxu0 %v512
    %727 = vmatprep.subr.bf16.mxu0 0
    %728 = vmatpush1.bf16.msra.mxu0 %v513
    %729 = vmatprep.subr.bf16.mxu0 0
    %730 = vmatpush1.bf16.msra.mxu0 %v514
    %731 = vmatprep.mubr.bf16.mxu0 %v186
    %732 = vmatmul.mubr.bf16.gmra.mrb[0].mxu0 %v185
    %v733 = vpop.f32.mrb[0].mxu0
    %v734 = vadd.f32 %v694, %v733
    %v735 = vpop.f32.mrb[0].mxu0
    %v736 = vpop.f32.mrb[0].mxu0
    %v737 = vpop.f32.mrb[0].mxu0
    %738 = vdwg.mxu0
    %v739 = vadd.f32 %v34, %v734
    %740 = vst [vmem:[%s3] sm:$0xff] %v739
    // Predicated region
    $region22: #{forward.1} parent=1 // pred_check
      %p741 = pneg %p29
    $region23: #{forward.1} parent=1 // pred_check_branch
      %743 = sbr.rel (%p741) target = $region25
    $region24: #{forward.1} parent=1 // pred_region
      %v744 = vld [vmem:[%s3] sm:$0xff]
      %v745 = vld [vmem:[%s2] sm:$0x1]
      %v747 = vlaneseq
      %v748 = vshrl.u32 %v747, 7
      %v749 = vsub.s32 0, %v748
      %v750 = vrot.slane %v745, %v749
      %v752 = vadd.f32 %v744, %v750
      %753 = vst [vmem:[%s3] sm:$0xff] %v752
    $region25: #{forward.1} parent=1 // pred_fallthru
      _
    // Predicated region
    $region26: #{forward.1} parent=1 // pred_check
      _
    $region27: #{forward.1} parent=1 // pred_check_branch
      %755 = sbr.rel (0) target = $region29
    $region28: #{forward.1} parent=1 // pred_region
      _
    $region29: #{forward.1} parent=1 // pred_fallthru
      _
    // Predicated region
    $region30: #{forward.1} parent=1 // pred_check
      _
    $region31: #{forward.1} parent=1 // pred_check_branch
      %757 = sbr.rel (0) target = $region33
    $region32: #{forward.1} parent=1 // pred_region
      _
    $region33: #{forward.1} parent=1 // pred_fallthru
      _
    %758 = vsyncpa [#allocation3], 1

</llo_original>
